<compile_context>
chip_gen: v7x
topology: tpu7x:2x2x1
jax: 0.10.0
libtpu: 0.0.40
codegen_flags: <defaults>
</compile_context>

<pallas_src>
import jax
import jax.numpy as jnp
from jax.experimental import pallas as pl
from jax.experimental.pallas import tpu as pltpu


def _round_up(a: int, m: int) -> int:
    return pl.cdiv(a, m) * m


def podnn_kernel(x_ref, w1_ref, b1_ref, w2_ref, b2_ref, w3_ref, b3_ref,
                 wout_ref, bout_ref, out_ref):
    # Numerically-stable softplus (matches torch.nn.Softplus / jax.nn.softplus).
    # Keep this formulation: padded batch rows run through it on bias-only
    # values and must not overflow.
    def softplus(v):
        return jnp.maximum(v, 0.0) + jnp.log1p(jnp.exp(-jnp.abs(v)))

    x = x_ref[...]                                            # (bt, 1)

    # Layer 1: input dim is 1 -> Linear(1, H) is a broadcasted outer product on
    # the VPU instead of a degenerate MXU matmul.
    h = softplus(x * w1_ref[...] + b1_ref[...])               # (bt, H)

    # Hidden layers 2 and 3: Linear + Softplus on the MXU. These are tiny
    # (K = H) and are recomputed per N tile; that recompute is <2% of the
    # expansion matmul's FLOPs and stays hidden under the streamed-W_out DMA.
    # TODO(synk): on v7x with bf16 output + very large N tiles, cache h across
    # N tiles in a per-batch-tile VMEM scratch (needs the reduction-style axis
    # marked "arbitrary"); marginal (<5%) on v5e/v6e so not done here.
    h = softplus(jnp.dot(h, w2_ref[...],
                         preferred_element_type=jnp.float32) + b2_ref[...])   # (bt, H)
    h = softplus(jnp.dot(h, w3_ref[...],
                         preferred_element_type=jnp.float32) + b3_ref[...])   # (bt, H)

    # Folded output Linear + POD expansion: single (bt, H) @ (H, nt) matmul.
    # W_out may be bf16 (memory-bound streaming); accumulate in f32.
    acc = jnp.dot(h.astype(wout_ref.dtype), wout_ref[...],
                  preferred_element_type=jnp.float32)                         # (bt, nt)
    out_ref[...] = (acc + bout_ref[...]).astype(out_ref.dtype)


def podnn_fold_params(params, basis, *, n_tile=4096, expansion_dtype=jnp.bfloat16):
    """One-time (per weight set) preparation: fold the output Linear into the
    POD expansion, pad the field dimension, and optionally narrow to bf16.

    out = (h @ w4 + b4) @ basis = h @ (w4 @ basis) + (b4 @ basis)

    Returns a dict consumed by `podnn_forward_folded`. Call this once and reuse
    it across forward calls -- recomputing it per call re-writes/re-reads a
    4*H*N-byte array through HBM, which for small batches exceeds the kernel's
    own output traffic.
    """
    w1, b1, w2, b2, w3, b3, w4, b4 = params
    N = basis.shape[1]

    W_out = jnp.dot(w4, basis, preferred_element_type=jnp.float32)   # (H, N)
    b_out = jnp.dot(b4, basis, preferred_element_type=jnp.float32)   # (1, N)

    # N tile: multiple of 128 (lane-dense, unmasked stores), chosen from a
    # ceil-split of the rounded field size so padding waste stays < 128*n_tiles.
    N128 = _round_up(N, 128)
    nt = min(n_tile, N128)
    n_ntiles = pl.cdiv(N128, nt)
    nt = _round_up(pl.cdiv(N128, n_ntiles), 128)
    N_pad = n_ntiles * nt

    if N_pad != N:
        W_out = jnp.pad(W_out, ((0, 0), (0, N_pad - N)))
        b_out = jnp.pad(b_out, ((0, 0), (0, N_pad - N)))

    # Narrow the streamed basis (halves HBM read + VMEM buffers); bf16 matmul
    # is native on the MXU on v5e/v6e/v7x, accumulation stays f32.
    W_out = W_out.astype(expansion_dtype)

    return dict(w1=w1, b1=b1, w2=w2, b2=b2, w3=w3, b3=b3,
                W_out=W_out, b_out=b_out, N=N, nt=nt)


def podnn_forward_folded(x, folded, *, b_tile=256, out_dtype=jnp.float32):
    """Per-call forward pass. x: (B, 1); `folded` from `podnn_fold_params`."""
    w1, b1, w2, b2, w3, b3 = (folded[k] for k in ("w1", "b1", "w2", "b2", "w3", "b3"))
    W_out, b_out = folded["W_out"], folded["b_out"]
    N, nt = folded["N"], folded["nt"]

    B = x.shape[0]
    H = w1.shape[1]
    N_pad = W_out.shape[1]
    n_ntiles = N_pad // nt

    # Batch tile: multiple of the output dtype's sublane packing (8 for f32,
    # 16 for bf16); picked from a ceil-split of the rounded batch so awkward
    # batch sizes (e.g. B = b_tile + 2) don't double the output writes.
    out_itemsize = jnp.dtype(out_dtype).itemsize
    sub = 8 * max(1, 4 // out_itemsize)
    B_sub = _round_up(B, sub)
    bt = min(_round_up(b_tile, sub), B_sub)
    n_btiles = pl.cdiv(B_sub, bt)
    bt = _round_up(pl.cdiv(B_sub, n_btiles), sub)
    B_pad = n_btiles * bt

    if B_pad != B:
        x = jnp.pad(x, ((0, B_pad - B), (0, 0)))

    # Grid: N tiles OUTER, batch tiles INNER. W_out / b_out block index depends
    # only on the outer axis, so Pallas keeps them resident (no re-DMA) while
    # the inner batch axis advances -> W_out streams from HBM exactly once.
    grid = (n_ntiles, n_btiles)

    resident = lambda i, j: (0, 0)
    in_specs = [
        pl.BlockSpec((bt, 1), lambda i, j: (j, 0)),     # x
        pl.BlockSpec((1, H), resident),                 # w1
        pl.BlockSpec((1, H), resident),                 # b1
        pl.BlockSpec((H, H), resident),                 # w2
        pl.BlockSpec((1, H), resident),                 # b2
        pl.BlockSpec((H, H), resident),                 # w3
        pl.BlockSpec((1, H), resident),                 # b3
        pl.BlockSpec((H, nt), lambda i, j: (0, i)),     # W_out (folded w4 @ basis)
        pl.BlockSpec((1, nt), lambda i, j: (0, i)),     # b_out (folded b4 @ basis)
    ]
    out_spec = pl.BlockSpec((bt, nt), lambda i, j: (j, i))

    # Explicit VMEM budget covering the double-buffered streamed operands plus
    # residents (with headroom). Default tiles give ~10 MB -> safe on v7x's
    # 64 MiB VMEM and above v5e's 16 MiB scoped default.
    wbytes = jnp.dtype(W_out.dtype).itemsize
    vmem_need = (2 * (bt * 4 + H * nt * wbytes + nt * 4 + bt * nt * out_itemsize)
                 + 2 * 4 * (2 * H * H + 4 * H)
                 + (1 << 20))
    vmem_limit = int(min(max(int(vmem_need * 1.25), 32 << 20), 120 << 20))

    # Cost estimate matching the actual schedule: layers 1-3 recomputed per
    # N tile, W_out streamed once, x re-read per N tile.
    cost = pl.CostEstimate(
        flops=int(2 * B_pad * H * N_pad
                  + n_ntiles * 2 * B_pad * (2 * H * H + H)),
        transcendentals=int(n_ntiles * 6 * B_pad * H),
        bytes_accessed=int(n_ntiles * B_pad * 4
                           + H * N_pad * wbytes + N_pad * 4
                           + 4 * (2 * H * H + 4 * H)
                           + B_pad * N_pad * out_itemsize),
    )

    out_padded = pl.pallas_call(
        podnn_kernel,
        out_shape=jax.ShapeDtypeStruct((B_pad, N_pad), out_dtype),
        grid_spec=pltpu.PrefetchScalarGridSpec(
            num_scalar_prefetch=0,
            grid=grid,
            in_specs=in_specs,
            out_specs=out_spec,
        ),
        compiler_params=pltpu.CompilerParams(
            dimension_semantics=("parallel", "parallel"),
            vmem_limit_bytes=vmem_limit,
        ),
        cost_estimate=cost,
    )(x, w1, b1, w2, b2, w3, b3, W_out, b_out)

    return out_padded[:B, :N]


def podnn_forward(x, params, basis, *, b_tile=256, n_tile=4096,
                  expansion_dtype=jnp.bfloat16, out_dtype=jnp.float32):
    """Convenience wrapper (folds + runs). In production, call
    `podnn_fold_params` once per weight set and reuse the result."""
    folded = podnn_fold_params(params, basis, n_tile=n_tile,
                               expansion_dtype=expansion_dtype)
    return podnn_forward_folded(x, folded, b_tile=b_tile, out_dtype=out_dtype)


def podnn_reference(x, params, basis):
    """Pure-JAX reference matching the PyTorch forward pass (unfolded)."""
    w1, b1, w2, b2, w3, b3, w4, b4 = params
    h = jax.nn.softplus(x @ w1 + b1)
    h = jax.nn.softplus(h @ w2 + b2)
    h = jax.nn.softplus(h @ w3 + b3)
    coeff = h @ w4 + b4
    return coeff @ basis


def _make_inputs(key, B, H, R, N):
    ks = jax.random.split(key, 10)
    x = jax.random.normal(ks[0], (B, 1), dtype=jnp.float32)
    w1 = jax.random.normal(ks[1], (1, H), dtype=jnp.float32) * 0.5
    b1 = jax.random.normal(ks[2], (1, H), dtype=jnp.float32) * 0.1
    w2 = jax.random.normal(ks[3], (H, H), dtype=jnp.float32) * (1.0 / jnp.sqrt(H))
    b2 = jax.random.normal(ks[4], (1, H), dtype=jnp.float32) * 0.1
    w3 = jax.random.normal(ks[5], (H, H), dtype=jnp.float32) * (1.0 / jnp.sqrt(H))
    b3 = jax.random.normal(ks[6], (1, H), dtype=jnp.float32) * 0.1
    w4 = jax.random.normal(ks[7], (H, R), dtype=jnp.float32) * (1.0 / jnp.sqrt(H))
    b4 = jax.random.normal(ks[8], (1, R), dtype=jnp.float32) * 0.1
    # Synthetic POD basis (rank, field); a real one comes from pod.fit() / SVD.
    basis = jax.random.normal(ks[9], (R, N), dtype=jnp.float32) * (1.0 / jnp.sqrt(R))
    params = (w1, b1, w2, b2, w3, b3, w4, b4)
    return x, params, basis


if __name__ == "__main__":
    # Small shapes consistent with PODNN(pod_rank, layers=[H, H, H], func=Softplus):
    #   FeedForward: 1 -> H -> H -> H -> pod_rank, POD basis: (pod_rank, N_field)
    key = jax.random.PRNGKey(0)
    k1, k2 = jax.random.split(key)

    # Case 1: aligned small shapes; fold hoisted once, kernel called twice.
    B, H, R, N = 8, 32, 16, 256
    x, params, basis = _make_inputs(k1, B, H, R, N)
    folded_f32 = podnn_fold_params(params, basis, expansion_dtype=jnp.float32)
    out = jax.block_until_ready(podnn_forward_folded(x, folded_f32))
    out_again = jax.block_until_ready(podnn_forward_folded(x, folded_f32))
    ref = podnn_reference(x, params, basis)
    assert out.shape == (B, N)
    # Affine fold reassociates the f32 sums -> slightly relaxed tolerance.
    assert jnp.allclose(out, ref, rtol=1e-4, atol=1e-4), "mismatch vs reference (case 1)"
    assert jnp.allclose(out_again, out), "reused-fold call mismatch (case 1)"

    # Case 2: unaligned shapes exercising the batch/N padding path (f32).
    B2, H2, R2, N2 = 5, 32, 16, 200
    x2, params2, basis2 = _make_inputs(k2, B2, H2, R2, N2)
    out2 = jax.block_until_ready(
        podnn_forward(x2, params2, basis2, expansion_dtype=jnp.float32))
    ref2 = podnn_reference(x2, params2, basis2)
    assert out2.shape == (B2, N2)
    assert jnp.allclose(out2, ref2, rtol=1e-4, atol=1e-4), "mismatch vs reference (case 2)"

    # Case 3: production path -- bf16 streamed basis + bf16 output (loose tol).
    out3 = jax.block_until_ready(
        podnn_forward(x, params, basis,
                      expansion_dtype=jnp.bfloat16, out_dtype=jnp.bfloat16))
    assert out3.shape == (B, N)
    assert jnp.allclose(out3.astype(jnp.float32), ref, rtol=5e-2, atol=1e-1), \
        "mismatch vs reference (case 3, bf16)"

    print("KERNEL_OK")
</pallas_src>

<mosaic_0001>
module attributes {stable_mosaic.version = 11 : i64} {
  func.func @podnn_kernel(%arg0: i32, %arg1: i32, %arg2: memref<8x1xf32, #tpu.memory_space<vmem>>, %arg3: memref<1x32xf32, #tpu.memory_space<vmem>>, %arg4: memref<1x32xf32, #tpu.memory_space<vmem>>, %arg5: memref<32x32xf32, #tpu.memory_space<vmem>>, %arg6: memref<1x32xf32, #tpu.memory_space<vmem>>, %arg7: memref<32x32xf32, #tpu.memory_space<vmem>>, %arg8: memref<1x32xf32, #tpu.memory_space<vmem>>, %arg9: memref<32x256xf32, #tpu.memory_space<vmem>>, %arg10: memref<1x256xf32, #tpu.memory_space<vmem>>, %arg11: memref<8x256xf32, #tpu.memory_space<vmem>>) attributes {dimension_semantics = [#tpu.dimension_semantics<parallel>, #tpu.dimension_semantics<parallel>], iteration_bounds = array<i64: 1, 1>, scalar_prefetch = 0 : i64, scratch_operands = 0 : i64, tpu.core_type = #tpu.core_type<tc>, window_params = [{transform_indices = @transform_0, window_bounds = array<i64: 8, 1>}, {pipeline_mode = #tpu.pipeline_mode<synchronous>, transform_indices = @transform_1, window_bounds = array<i64: 1, 32>}, {pipeline_mode = #tpu.pipeline_mode<synchronous>, transform_indices = @transform_2, window_bounds = array<i64: 1, 32>}, {pipeline_mode = #tpu.pipeline_mode<synchronous>, transform_indices = @transform_3, window_bounds = array<i64: 32, 32>}, {pipeline_mode = #tpu.pipeline_mode<synchronous>, transform_indices = @transform_4, window_bounds = array<i64: 1, 32>}, {pipeline_mode = #tpu.pipeline_mode<synchronous>, transform_indices = @transform_5, window_bounds = array<i64: 32, 32>}, {pipeline_mode = #tpu.pipeline_mode<synchronous>, transform_indices = @transform_6, window_bounds = array<i64: 1, 32>}, {transform_indices = @transform_7, window_bounds = array<i64: 32, 256>}, {transform_indices = @transform_8, window_bounds = array<i64: 1, 256>}, {transform_indices = @transform_9, window_bounds = array<i64: 8, 256>}]} {
    %c0 = arith.constant 0 : index
    %c0_0 = arith.constant 0 : index
    %0 = vector.load %arg2[%c0, %c0_0] : memref<8x1xf32, #tpu.memory_space<vmem>>, vector<8x1xf32>
    %c0_1 = arith.constant 0 : index
    %c0_2 = arith.constant 0 : index
    %1 = vector.load %arg3[%c0_1, %c0_2] : memref<1x32xf32, #tpu.memory_space<vmem>>, vector<1x32xf32>
    %2 = vector.broadcast %0 : vector<8x1xf32> to vector<8x32xf32>
    %3 = vector.broadcast %1 : vector<1x32xf32> to vector<8x32xf32>
    %4 = arith.mulf %2, %3 : vector<8x32xf32>
    %c0_3 = arith.constant 0 : index
    %c0_4 = arith.constant 0 : index
    %5 = vector.load %arg4[%c0_3, %c0_4] : memref<1x32xf32, #tpu.memory_space<vmem>>, vector<1x32xf32>
    %6 = vector.broadcast %5 : vector<1x32xf32> to vector<8x32xf32>
    %7 = arith.addf %4, %6 : vector<8x32xf32>
    %cst = arith.constant 0.000000e+00 : f32
    %8 = vector.broadcast %cst : f32 to vector<8x32xf32>
    %9 = arith.maximumf %7, %8 : vector<8x32xf32>
    %10 = math.absf %7 : vector<8x32xf32>
    %cst_5 = arith.constant 0.000000e+00 : f32
    %11 = vector.broadcast %cst_5 : f32 to vector<8x32xf32>
    %12 = arith.subf %11, %10 : vector<8x32xf32>
    %13 = math.exp %12 : vector<8x32xf32>
    %14 = math.log1p %13 : vector<8x32xf32>
    %15 = arith.addf %9, %14 : vector<8x32xf32>
    %c0_6 = arith.constant 0 : index
    %c0_7 = arith.constant 0 : index
    %16 = vector.load %arg5[%c0_6, %c0_7] : memref<32x32xf32, #tpu.memory_space<vmem>>, vector<32x32xf32>
    %cst_8 = arith.constant dense<0.000000e+00> : vector<8x32xf32>
    %17 = tpu.matmul %15, %16, %cst_8 {dimension_numbers = #tpu.dot_dimension_numbers<[1], [0], [0], [1], [0, 0, 1, 1], [], []>} : vector<8x32xf32>, vector<32x32xf32>, vector<8x32xf32> -> vector<8x32xf32>
    %c0_9 = arith.constant 0 : index
    %c0_10 = arith.constant 0 : index
    %18 = vector.load %arg6[%c0_9, %c0_10] : memref<1x32xf32, #tpu.memory_space<vmem>>, vector<1x32xf32>
    %19 = vector.broadcast %18 : vector<1x32xf32> to vector<8x32xf32>
    %20 = arith.addf %17, %19 : vector<8x32xf32>
    %cst_11 = arith.constant 0.000000e+00 : f32
    %21 = vector.broadcast %cst_11 : f32 to vector<8x32xf32>
    %22 = arith.maximumf %20, %21 : vector<8x32xf32>
    %23 = math.absf %20 : vector<8x32xf32>
    %cst_12 = arith.constant 0.000000e+00 : f32
    %24 = vector.broadcast %cst_12 : f32 to vector<8x32xf32>
    %25 = arith.subf %24, %23 : vector<8x32xf32>
    %26 = math.exp %25 : vector<8x32xf32>
    %27 = math.log1p %26 : vector<8x32xf32>
    %28 = arith.addf %22, %27 : vector<8x32xf32>
    %c0_13 = arith.constant 0 : index
    %c0_14 = arith.constant 0 : index
    %29 = vector.load %arg7[%c0_13, %c0_14] : memref<32x32xf32, #tpu.memory_space<vmem>>, vector<32x32xf32>
    %cst_15 = arith.constant dense<0.000000e+00> : vector<8x32xf32>
    %30 = tpu.matmul %28, %29, %cst_15 {dimension_numbers = #tpu.dot_dimension_numbers<[1], [0], [0], [1], [0, 0, 1, 1], [], []>} : vector<8x32xf32>, vector<32x32xf32>, vector<8x32xf32> -> vector<8x32xf32>
    %c0_16 = arith.constant 0 : index
    %c0_17 = arith.constant 0 : index
    %31 = vector.load %arg8[%c0_16, %c0_17] : memref<1x32xf32, #tpu.memory_space<vmem>>, vector<1x32xf32>
    %32 = vector.broadcast %31 : vector<1x32xf32> to vector<8x32xf32>
    %33 = arith.addf %30, %32 : vector<8x32xf32>
    %cst_18 = arith.constant 0.000000e+00 : f32
    %34 = vector.broadcast %cst_18 : f32 to vector<8x32xf32>
    %35 = arith.maximumf %33, %34 : vector<8x32xf32>
    %36 = math.absf %33 : vector<8x32xf32>
    %cst_19 = arith.constant 0.000000e+00 : f32
    %37 = vector.broadcast %cst_19 : f32 to vector<8x32xf32>
    %38 = arith.subf %37, %36 : vector<8x32xf32>
    %39 = math.exp %38 : vector<8x32xf32>
    %40 = math.log1p %39 : vector<8x32xf32>
    %41 = arith.addf %35, %40 : vector<8x32xf32>
    %c0_20 = arith.constant 0 : index
    %c0_21 = arith.constant 0 : index
    %42 = vector.load %arg9[%c0_20, %c0_21] : memref<32x256xf32, #tpu.memory_space<vmem>>, vector<32x256xf32>
    %cst_22 = arith.constant dense<0.000000e+00> : vector<8x256xf32>
    %43 = tpu.matmul %41, %42, %cst_22 {dimension_numbers = #tpu.dot_dimension_numbers<[1], [0], [0], [1], [0, 0, 1, 1], [], []>} : vector<8x32xf32>, vector<32x256xf32>, vector<8x256xf32> -> vector<8x256xf32>
    %c0_23 = arith.constant 0 : index
    %c0_24 = arith.constant 0 : index
    %44 = vector.load %arg10[%c0_23, %c0_24] : memref<1x256xf32, #tpu.memory_space<vmem>>, vector<1x256xf32>
    %45 = vector.broadcast %44 : vector<1x256xf32> to vector<8x256xf32>
    %46 = arith.addf %43, %45 : vector<8x256xf32>
    %c0_25 = arith.constant 0 : index
    %c0_26 = arith.constant 0 : index
    %47 = vector.load %arg11[%c0_25, %c0_26] : memref<8x256xf32, #tpu.memory_space<vmem>>, vector<8x256xf32>
    tpu.vector_store %arg11[%c0_25, %c0_26], %46 {strides = array<i32>} : memref<8x256xf32, #tpu.memory_space<vmem>>, vector<8x256xf32>,
    return
  }
  func.func @transform_0(%arg0: i32, %arg1: i32) -> (i32, i32) {
    %c0_i32 = arith.constant 0 : i32
    %c0_i32_0 = arith.constant 0 : i32
    return %arg1, %c0_i32 : i32, i32
  }
  func.func @transform_1(%arg0: i32, %arg1: i32) -> (i32, i32) {
    %c0_i32 = arith.constant 0 : i32
    %c0_i32_0 = arith.constant 0 : i32
    %c0_i32_1 = arith.constant 0 : i32
    return %c0_i32, %c0_i32_0 : i32, i32
  }
  func.func @transform_2(%arg0: i32, %arg1: i32) -> (i32, i32) {
    %c0_i32 = arith.constant 0 : i32
    %c0_i32_0 = arith.constant 0 : i32
    %c0_i32_1 = arith.constant 0 : i32
    return %c0_i32, %c0_i32_0 : i32, i32
  }
  func.func @transform_3(%arg0: i32, %arg1: i32) -> (i32, i32) {
    %c0_i32 = arith.constant 0 : i32
    %c0_i32_0 = arith.constant 0 : i32
    %c0_i32_1 = arith.constant 0 : i32
    return %c0_i32, %c0_i32_0 : i32, i32
  }
  func.func @transform_4(%arg0: i32, %arg1: i32) -> (i32, i32) {
    %c0_i32 = arith.constant 0 : i32
    %c0_i32_0 = arith.constant 0 : i32
    %c0_i32_1 = arith.constant 0 : i32
    return %c0_i32, %c0_i32_0 : i32, i32
  }
  func.func @transform_5(%arg0: i32, %arg1: i32) -> (i32, i32) {
    %c0_i32 = arith.constant 0 : i32
    %c0_i32_0 = arith.constant 0 : i32
    %c0_i32_1 = arith.constant 0 : i32
    return %c0_i32, %c0_i32_0 : i32, i32
  }
  func.func @transform_6(%arg0: i32, %arg1: i32) -> (i32, i32) {
    %c0_i32 = arith.constant 0 : i32
    %c0_i32_0 = arith.constant 0 : i32
    %c0_i32_1 = arith.constant 0 : i32
    return %c0_i32, %c0_i32_0 : i32, i32
  }
  func.func @transform_7(%arg0: i32, %arg1: i32) -> (i32, i32) {
    %c0_i32 = arith.constant 0 : i32
    %c0_i32_0 = arith.constant 0 : i32
    return %c0_i32, %arg0 : i32, i32
  }
  func.func @transform_8(%arg0: i32, %arg1: i32) -> (i32, i32) {
    %c0_i32 = arith.constant 0 : i32
    %c0_i32_0 = arith.constant 0 : i32
    return %c0_i32, %arg0 : i32, i32
  }
  func.func @transform_9(%arg0: i32, %arg1: i32) -> (i32, i32) {
    %c0_i32 = arith.constant 0 : i32
    return %arg1, %arg0 : i32, i32
  }
}

</mosaic_0001>

<llo_original>
// kernel: tpu_custom_call.1
$region0: #{tpu_custom_call.1}
  #allocation0 [shape = 'u32[]', space=smem, size = 0x4, offset = 0x4, fixed_abs, tag = 'smem constant byte address 0x4 - core index']
  #allocation1 [shape = 'u32[144,128]{1,0:T(1,128)}', space=vmem, size = 0x12000, scoped, tag = 'internal scratch']
  %s0 = inlined_call_operand.vmem [shape: f32[8,1], index: 0, kind: input, shape index: {}]
  %s1 = inlined_call_operand.vmem [shape: f32[1,32], index: 1, kind: input, shape index: {}]
  %s2 = inlined_call_operand.vmem [shape: f32[1,32], index: 2, kind: input, shape index: {}]
  %s3 = inlined_call_operand.hbm [shape: f32[32,32], index: 3, kind: input, shape index: {}]
  %s4 = inlined_call_operand.vmem [shape: f32[1,32], index: 4, kind: input, shape index: {}]
  %s5 = inlined_call_operand.hbm [shape: f32[32,32], index: 5, kind: input, shape index: {}]
  %s6 = inlined_call_operand.vmem [shape: f32[1,32], index: 6, kind: input, shape index: {}]
  %s7 = inlined_call_operand.hbm [shape: f32[32,256], index: 7, kind: input, shape index: {}]
  %s8 = inlined_call_operand.vmem [shape: f32[1,256], index: 8, kind: input, shape index: {}]
  %s9 = inlined_call_operand.hbm [shape: f32[8,256], index: 9, kind: output, shape index: {}]
  %s10 = sld [smem:[#allocation0]]
  $region58: #{tpu_custom_call.1} parent=0
    _
  %s12 = ssub.s32 1, %s10
  %s13 = scalar_select 0, %s12, %s10
  $region1: #{tpu_custom_call.1} parent=0
    #allocation2 [shape = 'u8[16384]{0}', space=vmem, size = 0x4000, scoped, tag = 'input window, operand 3, single buffered']
    #allocation3 [shape = 's32[1]{0}', space=sflag, size = 0x4, scoped, tag = 'scoped memory for tpu_custom_call.1']
    #allocation4 [shape = 's32[1]{0}', space=sflag, size = 0x4, scoped, tag = 'scoped memory for tpu_custom_call.1']
    #allocation5 [shape = 'u8[16384]{0}', space=vmem, size = 0x4000, scoped, tag = 'input window, operand 5, single buffered']
    #allocation6 [shape = 's32[1]{0}', space=sflag, size = 0x4, scoped, tag = 'scoped memory for tpu_custom_call.1']
    #allocation7 [shape = 'u8[32768]{0}', space=vmem, size = 0x8000, scoped, tag = 'input window, operand 7, single buffered']
    #allocation8 [shape = 'u8[8192]{0}', space=vmem, size = 0x2000, scoped, tag = 'output window, operand 0, single buffered']
    %14 = vsyncpa [#allocation3], 0
    %15 = vsyncpa [#allocation6], 0
    %16 = vsyncpa [#allocation4], 0
    // Predicated region
    $region2: #{tpu_custom_call.1} parent=1 // pred_check
      _
    $region3: #{tpu_custom_call.1} parent=1 // pred_check_branch
      %18 = sbr.rel (0) target = $region5
    $region4: #{tpu_custom_call.1} parent=1 // pred_region
      _
    $region5: #{tpu_custom_call.1} parent=1 // pred_fallthru
      _
    // Predicated region
    $region6: #{tpu_custom_call.1} parent=1 // pred_check
      _
    $region7: #{tpu_custom_call.1} parent=1 // pred_check_branch
      %20 = sbr.rel (0) target = $region9
    $region8: #{tpu_custom_call.1} parent=1 // pred_region
      _
    $region9: #{tpu_custom_call.1} parent=1 // pred_fallthru
      _
    // Predicated region
    $region10: #{tpu_custom_call.1} parent=1 // pred_check
      _
    $region11: #{tpu_custom_call.1} parent=1 // pred_check_branch
      %22 = sbr.rel (0) target = $region13
    $region12: #{tpu_custom_call.1} parent=1 // pred_region
      _
    $region13: #{tpu_custom_call.1} parent=1 // pred_fallthru
      _
    // Predicated region
    $region14: #{tpu_custom_call.1} parent=1 // pred_check
      _
    $region15: #{tpu_custom_call.1} parent=1 // pred_check_branch
      %24 = sbr.rel (0) target = $region17
    $region16: #{tpu_custom_call.1} parent=1 // pred_region
      %s26 = ssub.s32 512, 512
      %27 = vsyncadd [#allocation3], %s26
      %s28 = sshll.u32 [#allocation2], 4
      %s29 = int_to_ptr.vmem [resolvable:$true] %s28
      %34 = dma.hbm_to_vmem [thread:$0]  %s3, 512, %s29, [#allocation3], 128, 128, 8
    $region17: #{tpu_custom_call.1} parent=1 // pred_fallthru
      _
    // Predicated region
    $region18: #{tpu_custom_call.1} parent=1 // pred_check
      _
    $region19: #{tpu_custom_call.1} parent=1 // pred_check_branch
      %36 = sbr.rel (0) target = $region21
    $region20: #{tpu_custom_call.1} parent=1 // pred_region
      _
    $region21: #{tpu_custom_call.1} parent=1 // pred_fallthru
      _
    // Predicated region
    $region22: #{tpu_custom_call.1} parent=1 // pred_check
      _
    $region23: #{tpu_custom_call.1} parent=1 // pred_check_branch
      %38 = sbr.rel (0) target = $region25
    $region24: #{tpu_custom_call.1} parent=1 // pred_region
      %s40 = ssub.s32 512, 512
      %41 = vsyncadd [#allocation6], %s40
      %s42 = sshll.u32 [#allocation5], 4
      %s43 = int_to_ptr.vmem [resolvable:$true] %s42
      %48 = dma.hbm_to_vmem [thread:$0]  %s5, 512, %s43, [#allocation6], 128, 128, 8
    $region25: #{tpu_custom_call.1} parent=1 // pred_fallthru
      _
    // Predicated region
    $region26: #{tpu_custom_call.1} parent=1 // pred_check
      _
    $region27: #{tpu_custom_call.1} parent=1 // pred_check_branch
      %50 = sbr.rel (0) target = $region29
    $region28: #{tpu_custom_call.1} parent=1 // pred_region
      _
    $region29: #{tpu_custom_call.1} parent=1 // pred_fallthru
      _
    // Predicated region
    $region30: #{tpu_custom_call.1} parent=1 // pred_check
      _
    $region31: #{tpu_custom_call.1} parent=1 // pred_check_branch
      %52 = sbr.rel (0) target = $region33
    $region32: #{tpu_custom_call.1} parent=1 // pred_region
      %s54 = ssub.s32 1024, 1024
      %55 = vsyncadd [#allocation6], %s54
      %s56 = sshll.u32 [#allocation7], 4
      %s57 = int_to_ptr.vmem [resolvable:$true] %s56
      %62 = dma.hbm_to_vmem [thread:$0]  %s7, 1024, %s57, [#allocation6], 256, 256, 16
    $region33: #{tpu_custom_call.1} parent=1 // pred_fallthru
      _
    // Predicated region
    $region34: #{tpu_custom_call.1} parent=1 // pred_check
      _
    $region35: #{tpu_custom_call.1} parent=1 // pred_check_branch
      %64 = sbr.rel (0) target = $region37
    $region36: #{tpu_custom_call.1} parent=1 // pred_region
      _
    $region37: #{tpu_custom_call.1} parent=1 // pred_fallthru
      _
    // Predicated region
    $region38: #{tpu_custom_call.1} parent=1 // pred_check
      _
    $region39: #{tpu_custom_call.1} parent=1 // pred_check_branch
      %66 = sbr.rel (0) target = $region41
    $region40: #{tpu_custom_call.1} parent=1 // pred_region
      %67 = dma.done [#allocation3], 512
    $region41: #{tpu_custom_call.1} parent=1 // pred_fallthru
      _
    // Predicated region
    $region42: #{tpu_custom_call.1} parent=1 // pred_check
      _
    $region43: #{tpu_custom_call.1} parent=1 // pred_check_branch
      %69 = sbr.rel (0) target = $region45
    $region44: #{tpu_custom_call.1} parent=1 // pred_region
      %70 = dma.done [#allocation6], 512
    $region45: #{tpu_custom_call.1} parent=1 // pred_fallthru
      _
    // Predicated region
    $region46: #{tpu_custom_call.1} parent=1 // pred_check
      _
    $region47: #{tpu_custom_call.1} parent=1 // pred_check_branch
      %72 = sbr.rel (0) target = $region49
    $region48: #{tpu_custom_call.1} parent=1 // pred_region
      %73 = dma.done [#allocation6], 1024
    $region49: #{tpu_custom_call.1} parent=1 // pred_fallthru
      _
    %v74 = vld [vmem:[%s0] sm:$0xff]
    %v75 = vld [vmem:[%s1] sm:$0x1]
    %77 = vset.pattern.permute.xlu0 0
    %78 = vperm.xlu0 %77, %v74
    %v79 = vpop.permute.xlu0 %78
    %v82 = vlaneseq
    %v83 = vshrl.u32 %v82, 7
    %v84 = vsub.s32 0, %v83
    %v85 = vrot.slane %v75, %v84
    %v87 = vmul.f32 %v79, %v85
    %v88 = vld [vmem:[%s2] sm:$0x1]
    %v90 = vlaneseq
    %v91 = vshrl.u32 %v90, 7
    %v92 = vsub.s32 0, %v91
    %v93 = vrot.slane %v88, %v92
    %v95 = vadd.f32 %v87, %v93
    %v96 = vmax.f32 %v95, 0.0
    %v97 = vand.u32 2147483647, %v95
    %v98 = vsub.f32 0.0, %v97
    %v99 = vmul.f32 %v98, 1.442695
    %v100 = vpow.pop %v99
    %v101 = vadd.f32 %v100, 1.0
    %v102 = vlog2.pop %v101
    %v103 = vmul.f32 %v102, 0.6931472
    %v104 = vmul.f32 -0.5, %v100
    %v105 = vadd.f32 %v104, 1.0
    %v106 = vmul.f32 %v105, %v100
    %v107 = vand.u32 2147483647, %v100
    %vm108 = vcmp.lt.f32.partialorder %v107, 0.0004427343
    %v109 = vsel %vm108, %v106, %v103
    %v110 = vadd.f32 %v96, %v109
    %v111 = vld [vmem:[#allocation2] sm:$0xff]
    %v112 = vld [vmem:[#allocation2 + $0x8] sm:$0xff]
    %v113 = vld [vmem:[#allocation2 + $0x10] sm:$0xff]
    %v114 = vld [vmem:[#allocation2 + $0x18] sm:$0xff]
    %v115 = vld [vmem:[%s4] sm:$0x1]
    %v117 = vlaneseq
    %v118 = vshrl.u32 %v117, 7
    %v119 = vsub.s32 0, %v118
    %v120 = vrot.slane %v115, %v119
    %vm122 = vcmask 261120
    %v124 = vsel %vm122, %v110, 0
    %126 = vmatprep.subr.mxu0 0.0
    %127 = vmatpush1.msra.mxu0 %v111
    %128 = vmatprep.subr.mxu0 0.0
    %129 = vmatpush1.msra.mxu0 %v112
    %130 = vmatprep.subr.mxu0 0.0
    %131 = vmatpush1.msra.mxu0 %v113
    %132 = vmatprep.subr.mxu0 0.0
    %133 = vmatpush1.msra.mxu0 %v114
    %134 = vmatprep.subr.mxu0 0.0
    %135 = vmatpush1.msra.mxu0 0.0
    %136 = vmatprep.subr.mxu0 0.0
    %137 = vmatpush1.msra.mxu0 0.0
    %138 = vmatprep.subr.mxu0 0.0
    %139 = vmatpush1.msra.mxu0 0.0
    %140 = vmatprep.subr.mxu0 0.0
    %141 = vmatpush1.msra.mxu0 0.0
    %142 = vmatprep.subr.mxu0 0.0
    %143 = vmatpush1.msra.mxu0 0.0
    %144 = vmatprep.subr.mxu0 0.0
    %145 = vmatpush1.msra.mxu0 0.0
    %146 = vmatprep.subr.mxu0 0.0
    %147 = vmatpush1.msra.mxu0 0.0
    %148 = vmatprep.subr.mxu0 0.0
    %149 = vmatpush1.msra.mxu0 0.0
    %150 = vmatprep.subr.mxu0 0.0
    %151 = vmatpush1.msra.mxu0 0.0
    %152 = vmatprep.subr.mxu0 0.0
    %153 = vmatpush1.msra.mxu0 0.0
    %154 = vmatprep.subr.mxu0 0.0
    %155 = vmatpush1.msra.mxu0 0.0
    %156 = vmatprep.subr.mxu0 0.0
    %157 = vmatpush1.msra.mxu0 0.0
    %158 = vmatprep.subr.mxu0 0.0
    %159 = vmatpush1.msra.mxu0 0.0
    %160 = vmatprep.subr.mxu0 0.0
    %161 = vmatpush1.msra.mxu0 0.0
    %162 = vmatprep.subr.mxu0 0.0
    %163 = vmatpush1.msra.mxu0 0.0
    %164 = vmatprep.subr.mxu0 0.0
    %165 = vmatpush1.msra.mxu0 0.0
    %166 = vmatprep.subr.mxu0 0.0
    %167 = vmatpush1.msra.mxu0 0.0
    %168 = vmatprep.subr.mxu0 0.0
    %169 = vmatpush1.msra.mxu0 0.0
    %170 = vmatprep.subr.mxu0 0.0
    %171 = vmatpush1.msra.mxu0 0.0
    %172 = vmatprep.subr.mxu0 0.0
    %173 = vmatpush1.msra.mxu0 0.0
    %174 = vmatprep.subr.mxu0 0.0
    %175 = vmatpush1.msra.mxu0 0.0
    %176 = vmatprep.subr.mxu0 0.0
    %177 = vmatpush1.msra.mxu0 0.0
    %178 = vmatprep.subr.mxu0 0.0
    %179 = vmatpush1.msra.mxu0 0.0
    %180 = vmatprep.subr.mxu0 0.0
    %181 = vmatpush1.msra.mxu0 0.0
    %182 = vmatprep.subr.mxu0 0.0
    %183 = vmatpush1.msra.mxu0 0.0
    %184 = vmatprep.subr.mxu0 0.0
    %185 = vmatpush1.msra.mxu0 0.0
    %186 = vmatprep.subr.mxu0 0.0
    %187 = vmatpush1.msra.mxu0 0.0
    %188 = vmatprep.subr.mxu0 0.0
    %189 = vmatpush1.msra.mxu0 0.0
    %190 = vmatprep.mubr.f32.mxu0 0.0
    %191 = vmatmul.mubr.f32.gmra.mrb[0].mxu0 %v124
    %v192 = vpop.f32.mrb[0].mxu0
    %v193 = vadd.f32 %v120, %v192
    %v194 = vpop.f32.mrb[0].mxu0
    %195 = vdwg.mxu0
    %v196 = vmax.f32 %v193, 0.0
    %v197 = vand.u32 2147483647, %v193
    %v198 = vsub.f32 0.0, %v197
    %v199 = vmul.f32 %v198, 1.442695
    %v200 = vpow.pop %v199
    %v201 = vadd.f32 %v200, 1.0
    %v202 = vlog2.pop %v201
    %v203 = vmul.f32 %v202, 0.6931472
    %v204 = vmul.f32 -0.5, %v200
    %v205 = vadd.f32 %v204, 1.0
    %v206 = vmul.f32 %v205, %v200
    %v207 = vand.u32 2147483647, %v200
    %vm208 = vcmp.lt.f32.partialorder %v207, 0.0004427343
    %v209 = vsel %vm208, %v206, %v203
    %v210 = vadd.f32 %v196, %v209
    %v211 = vld [vmem:[#allocation5] sm:$0xff]
    %v212 = vld [vmem:[#allocation5 + $0x8] sm:$0xff]
    %v213 = vld [vmem:[#allocation5 + $0x10] sm:$0xff]
    %v214 = vld [vmem:[#allocation5 + $0x18] sm:$0xff]
    %v215 = vld [vmem:[%s6] sm:$0x1]
    %v217 = vlaneseq
    %v218 = vshrl.u32 %v217, 7
    %v219 = vsub.s32 0, %v218
    %v220 = vrot.slane %v215, %v219
    %v223 = vsel %vm122, %v210, 0
    %225 = vmatprep.subr.mxu0 0.0
    %226 = vmatpush1.msra.mxu0 %v211
    %227 = vmatprep.subr.mxu0 0.0
    %228 = vmatpush1.msra.mxu0 %v212
    %229 = vmatprep.subr.mxu0 0.0
    %230 = vmatpush1.msra.mxu0 %v213
    %231 = vmatprep.subr.mxu0 0.0
    %232 = vmatpush1.msra.mxu0 %v214
    %233 = vmatprep.subr.mxu0 0.0
    %234 = vmatpush1.msra.mxu0 0.0
    %235 = vmatprep.subr.mxu0 0.0
    %236 = vmatpush1.msra.mxu0 0.0
    %237 = vmatprep.subr.mxu0 0.0
    %238 = vmatpush1.msra.mxu0 0.0
    %239 = vmatprep.subr.mxu0 0.0
    %240 = vmatpush1.msra.mxu0 0.0
    %241 = vmatprep.subr.mxu0 0.0
    %242 = vmatpush1.msra.mxu0 0.0
    %243 = vmatprep.subr.mxu0 0.0
    %244 = vmatpush1.msra.mxu0 0.0
    %245 = vmatprep.subr.mxu0 0.0
    %246 = vmatpush1.msra.mxu0 0.0
    %247 = vmatprep.subr.mxu0 0.0
    %248 = vmatpush1.msra.mxu0 0.0
    %249 = vmatprep.subr.mxu0 0.0
    %250 = vmatpush1.msra.mxu0 0.0
    %251 = vmatprep.subr.mxu0 0.0
    %252 = vmatpush1.msra.mxu0 0.0
    %253 = vmatprep.subr.mxu0 0.0
    %254 = vmatpush1.msra.mxu0 0.0
    %255 = vmatprep.subr.mxu0 0.0
    %256 = vmatpush1.msra.mxu0 0.0
    %257 = vmatprep.subr.mxu0 0.0
    %258 = vmatpush1.msra.mxu0 0.0
    %259 = vmatprep.subr.mxu0 0.0
    %260 = vmatpush1.msra.mxu0 0.0
    %261 = vmatprep.subr.mxu0 0.0
    %262 = vmatpush1.msra.mxu0 0.0
    %263 = vmatprep.subr.mxu0 0.0
    %264 = vmatpush1.msra.mxu0 0.0
    %265 = vmatprep.subr.mxu0 0.0
    %266 = vmatpush1.msra.mxu0 0.0
    %267 = vmatprep.subr.mxu0 0.0
    %268 = vmatpush1.msra.mxu0 0.0
    %269 = vmatprep.subr.mxu0 0.0
    %270 = vmatpush1.msra.mxu0 0.0
    %271 = vmatprep.subr.mxu0 0.0
    %272 = vmatpush1.msra.mxu0 0.0
    %273 = vmatprep.subr.mxu0 0.0
    %274 = vmatpush1.msra.mxu0 0.0
    %275 = vmatprep.subr.mxu0 0.0
    %276 = vmatpush1.msra.mxu0 0.0
    %277 = vmatprep.subr.mxu0 0.0
    %278 = vmatpush1.msra.mxu0 0.0
    %279 = vmatprep.subr.mxu0 0.0
    %280 = vmatpush1.msra.mxu0 0.0
    %281 = vmatprep.subr.mxu0 0.0
    %282 = vmatpush1.msra.mxu0 0.0
    %283 = vmatprep.subr.mxu0 0.0
    %284 = vmatpush1.msra.mxu0 0.0
    %285 = vmatprep.subr.mxu0 0.0
    %286 = vmatpush1.msra.mxu0 0.0
    %287 = vmatprep.subr.mxu0 0.0
    %288 = vmatpush1.msra.mxu0 0.0
    %289 = vmatprep.mubr.f32.mxu0 0.0
    %290 = vmatmul.mubr.f32.gmra.mrb[0].mxu0 %v223
    %v291 = vpop.f32.mrb[0].mxu0
    %v292 = vadd.f32 %v220, %v291
    %v293 = vpop.f32.mrb[0].mxu0
    %294 = vdwg.mxu0
    %v295 = vmax.f32 %v292, 0.0
    %v296 = vand.u32 2147483647, %v292
    %v297 = vsub.f32 0.0, %v296
    %v298 = vmul.f32 %v297, 1.442695
    %v299 = vpow.pop %v298
    %v300 = vadd.f32 %v299, 1.0
    %v301 = vlog2.pop %v300
    %v302 = vmul.f32 %v301, 0.6931472
    %v303 = vmul.f32 -0.5, %v299
    %v304 = vadd.f32 %v303, 1.0
    %v305 = vmul.f32 %v304, %v299
    %v306 = vand.u32 2147483647, %v299
    %vm307 = vcmp.lt.f32.partialorder %v306, 0.0004427343
    %v308 = vsel %vm307, %v305, %v302
    %v309 = vadd.f32 %v295, %v308
    %v310 = vld [vmem:[#allocation7] sm:$0xff]
    %v311 = vld [vmem:[#allocation7 + $0x8] sm:$0xff]
    %v312 = vld [vmem:[#allocation7 + $0x10] sm:$0xff]
    %v313 = vld [vmem:[#allocation7 + $0x18] sm:$0xff]
    %v314 = vld [vmem:[#allocation7 + $0x20] sm:$0xff]
    %v315 = vld [vmem:[#allocation7 + $0x28] sm:$0xff]
    %v316 = vld [vmem:[#allocation7 + $0x30] sm:$0xff]
    %v317 = vld [vmem:[#allocation7 + $0x38] sm:$0xff]
    %v318 = vld [vmem:[%s8] sm:$0x3]
    %v320 = vlaneseq
    %v321 = vshrl.u32 %v320, 7
    %v322 = vsub.s32 0, %v321
    %v323 = vrot.slane %v318, %v322
    %v324 = vlaneseq
    %v325 = vshrl.u32 %v324, 7
    %v326 = vsub.s32 1, %v325
    %v327 = vrot.slane %v318, %v326
    %v331 = vsel %vm122, %v309, 0
    %333 = vmatprep.subr.mxu0 %v311
    %334 = vmatpush1.msra.mxu0 %v310
    %335 = vmatprep.subr.mxu0 %v313
    %336 = vmatpush1.msra.mxu0 %v312
    %337 = vmatprep.subr.mxu0 %v315
    %338 = vmatpush1.msra.mxu0 %v314
    %339 = vmatprep.subr.mxu0 %v317
    %340 = vmatpush1.msra.mxu0 %v316
    %341 = vmatprep.subr.mxu0 0.0
    %342 = vmatpush1.msra.mxu0 0.0
    %343 = vmatprep.subr.mxu0 0.0
    %344 = vmatpush1.msra.mxu0 0.0
    %345 = vmatprep.subr.mxu0 0.0
    %346 = vmatpush1.msra.mxu0 0.0
    %347 = vmatprep.subr.mxu0 0.0
    %348 = vmatpush1.msra.mxu0 0.0
    %349 = vmatprep.subr.mxu0 0.0
    %350 = vmatpush1.msra.mxu0 0.0
    %351 = vmatprep.subr.mxu0 0.0
    %352 = vmatpush1.msra.mxu0 0.0
    %353 = vmatprep.subr.mxu0 0.0
    %354 = vmatpush1.msra.mxu0 0.0
    %355 = vmatprep.subr.mxu0 0.0
    %356 = vmatpush1.msra.mxu0 0.0
    %357 = vmatprep.subr.mxu0 0.0
    %358 = vmatpush1.msra.mxu0 0.0
    %359 = vmatprep.subr.mxu0 0.0
    %360 = vmatpush1.msra.mxu0 0.0
    %361 = vmatprep.subr.mxu0 0.0
    %362 = vmatpush1.msra.mxu0 0.0
    %363 = vmatprep.subr.mxu0 0.0
    %364 = vmatpush1.msra.mxu0 0.0
    %365 = vmatprep.subr.mxu0 0.0
    %366 = vmatpush1.msra.mxu0 0.0
    %367 = vmatprep.subr.mxu0 0.0
    %368 = vmatpush1.msra.mxu0 0.0
    %369 = vmatprep.subr.mxu0 0.0
    %370 = vmatpush1.msra.mxu0 0.0
    %371 = vmatprep.subr.mxu0 0.0
    %372 = vmatpush1.msra.mxu0 0.0
    %373 = vmatprep.subr.mxu0 0.0
    %374 = vmatpush1.msra.mxu0 0.0
    %375 = vmatprep.subr.mxu0 0.0
    %376 = vmatpush1.msra.mxu0 0.0
    %377 = vmatprep.subr.mxu0 0.0
    %378 = vmatpush1.msra.mxu0 0.0
    %379 = vmatprep.subr.mxu0 0.0
    %380 = vmatpush1.msra.mxu0 0.0
    %381 = vmatprep.subr.mxu0 0.0
    %382 = vmatpush1.msra.mxu0 0.0
    %383 = vmatprep.subr.mxu0 0.0
    %384 = vmatpush1.msra.mxu0 0.0
    %385 = vmatprep.subr.mxu0 0.0
    %386 = vmatpush1.msra.mxu0 0.0
    %387 = vmatprep.subr.mxu0 0.0
    %388 = vmatpush1.msra.mxu0 0.0
    %389 = vmatprep.subr.mxu0 0.0
    %390 = vmatpush1.msra.mxu0 0.0
    %391 = vmatprep.subr.mxu0 0.0
    %392 = vmatpush1.msra.mxu0 0.0
    %393 = vmatprep.subr.mxu0 0.0
    %394 = vmatpush1.msra.mxu0 0.0
    %395 = vmatprep.subr.mxu0 0.0
    %396 = vmatpush1.msra.mxu0 0.0
    %397 = vmatprep.mubr.f32.mxu0 0.0
    %398 = vmatmul.mubr.f32.gmra.mrb[0].mxu0 %v331
    %v399 = vpop.f32.mrb[0].mxu0
    %v400 = vadd.f32 %v323, %v399
    %v401 = vpop.f32.mrb[0].mxu0
    %v402 = vadd.f32 %v327, %v401
    %403 = vdwg.mxu0
    %404 = vst [vmem:[#allocation8] sm:$0xff] %v400
    %405 = vst [vmem:[#allocation8 + $0x8] sm:$0xff] %v402
    // Predicated region
    $region50: #{tpu_custom_call.1} parent=1 // pred_check
      _
    $region51: #{tpu_custom_call.1} parent=1 // pred_check_branch
      %407 = sbr.rel (0) target = $region53
    $region52: #{tpu_custom_call.1} parent=1 // pred_region
      %s409 = ssub.s32 256, 256
      %410 = vsyncadd [#allocation4], %s409
      %s412 = sshll.u32 [#allocation8], 4
      %s413 = int_to_ptr.vmem [resolvable:$true] %s412
      %415 = dma.vmem_to_hbm [thread:$0]  %s413, 256, %s9, [#allocation4]
    $region53: #{tpu_custom_call.1} parent=1 // pred_fallthru
      _
    // Predicated region
    $region54: #{tpu_custom_call.1} parent=1 // pred_check
      _
    $region55: #{tpu_custom_call.1} parent=1 // pred_check_branch
      %417 = sbr.rel (0) target = $region57
    $region56: #{tpu_custom_call.1} parent=1 // pred_region
      %418 = dma.done [#allocation4], 256
    $region57: #{tpu_custom_call.1} parent=1 // pred_fallthru
      _
    %419 = vsyncpa [#allocation3], 1
    %420 = vsyncpa [#allocation6], 1
    %421 = vsyncpa [#allocation4], 1

</llo_original>
